<compile_context>
chip_gen: v6e
topology: v6e:2x2x1
jax: 0.10.0
libtpu: 0.0.40
codegen_flags: <defaults>
</compile_context>

<pallas_src>
import functools

import jax
import jax.numpy as jnp
from jax.experimental import pallas as pl
from jax.experimental.pallas import tpu as pltpu


def _round_up(x, m):
    return ((x + m - 1) // m) * m


def _round_down(x, m):
    return (x // m) * m


def _cdiv(a, b):
    return (a + b - 1) // b


# --------------------------------------------------------------------------
# Kernel body
# --------------------------------------------------------------------------
def _residual_gate_mixer_kernel(ha_ref, hb_ref, wa_ref, wb_ref, b_ref, o_ref,
                                *, matmul_dtype):
    ha = ha_ref[...]
    hb = hb_ref[...]
    # Linear over the concatenated input = two MXU matmuls. Written as an
    # explicit accumulation chain so v7x's MRB can accumulate in place
    # (on v5e/v6e the pop+vadd is hidden under the MXU anyway).
    z = jnp.dot(ha.astype(matmul_dtype), wa_ref[...],
                preferred_element_type=jnp.float32)
    z = z + jnp.dot(hb.astype(matmul_dtype), wb_ref[...],
                    preferred_element_type=jnp.float32)
    z = z + b_ref[...]
    gate = jax.nn.sigmoid(z)                        # EUP, f32
    ha_f = ha.astype(jnp.float32)
    hb_f = hb.astype(jnp.float32)
    out = hb_f + gate * (ha_f - hb_f)               # == gate*ha + (1-gate)*hb
    o_ref[...] = out.astype(o_ref.dtype)


# --------------------------------------------------------------------------
# One-time parameter prep (hoist out of the per-step path)
# --------------------------------------------------------------------------
def prepare_gate_params(weight, bias, *, matmul_dtype=jnp.bfloat16):
    """Prep nn.Linear(2*d_model, d_model) params.

    weight: (d_model, 2*d_model), bias: (d_model,).
    Returns (w_a, w_b, bias2d): split, transposed (kernel computes h @ W
    directly), padded to lane-dense multiples of 128, cast to matmul dtype.
    The f32 matmul_dtype path is for validation only; ship bf16 (the MXU's
    native rate, especially on v5e where f32 matmul is multi-pass).
    """
    d_model = weight.shape[0]
    assert weight.shape == (d_model, 2 * d_model)
    assert bias.shape == (d_model,)
    d_pad = _round_up(d_model, 128)

    w_a = weight[:, :d_model].T.astype(matmul_dtype)   # (d_model, d_model)
    w_b = weight[:, d_model:].T.astype(matmul_dtype)
    pad = ((0, d_pad - d_model), (0, d_pad - d_model))
    w_a = jnp.pad(w_a, pad)
    w_b = jnp.pad(w_b, pad)
    b2 = jnp.pad(bias.astype(jnp.float32), (0, d_pad - d_model)).reshape(1, d_pad)
    return w_a, w_b, b2


# --------------------------------------------------------------------------
# VMEM budgeting + row-tile selection
# --------------------------------------------------------------------------
def _vmem_capacity_bytes():
    try:
        info = pltpu.get_tpu_info()
        cap = getattr(info, "vmem_capacity_bytes", None)
        if cap:
            return int(cap)
    except Exception:
        pass
    return 64 << 20  # conservative default (v7x per-core VMEM)


def _plan_tiles(n, d_pad, act_itemsize, w_itemsize, requested_row_tile):
    """Pick (row_tile, n_pad, vmem_limit_bytes)."""
    cap = _vmem_capacity_bytes()
    budget = int(cap * 0.85)                       # headroom for Mosaic temps

    # Resident (single-buffered) weights + bias.
    fixed = 2 * d_pad * d_pad * w_itemsize + 2 * d_pad * 4
    # Per-row VMEM: ha/hb/out double-buffered at the activation dtype plus
    # ~4 f32-sized epilogue temporaries (z, gate, diff, out) per tile.
    per_row = d_pad * (3 * 2 * act_itemsize + 4 * 4)

    avail = budget - fixed
    if avail <= per_row * 8:
        # Weights barely (or don't) fit; fall back to the smallest tile.
        # TODO(synk): column-tile the weights here for very large d_model.
        row_tile_cap = 8
    else:
        row_tile_cap = max(8, _round_down(avail // per_row, 8))

    target = max(8, _round_down(min(requested_row_tile, row_tile_cap), 8))

    # Balanced tiling: cap per-tile padding waste at <8 rows instead of
    # rounding n up to the next `target`.
    n_tiles = max(1, _cdiv(n, target))
    if n >= 16 and n_tiles < 2:
        n_tiles = 2                                # keep both v7x TCs busy
    row_tile = _round_up(_cdiv(n, n_tiles), 8)
    row_tile = min(row_tile, target)
    n_pad = _round_up(n, row_tile)

    needed = fixed + per_row * row_tile + (2 << 20)  # +2 MiB slack
    vmem_limit = int(min(max(needed, 32 << 20), budget))
    return row_tile, n_pad, vmem_limit


# --------------------------------------------------------------------------
# Public wrapper
# --------------------------------------------------------------------------
def residual_gate_mixer(h_A, h_B, w_a, w_b, bias2d, *, row_tile=512):
    """h_A, h_B: (..., d_model); (w_a, w_b, bias2d) from prepare_gate_params.

    Output dtype matches h_A's dtype (pass bf16 activations for the
    bandwidth-optimal path).
    """
    assert h_A.shape == h_B.shape, "h_A and h_B must have the same shape"
    d_model = h_A.shape[-1]
    d_pad = w_a.shape[0]
    assert w_a.shape == (d_pad, d_pad) and w_b.shape == (d_pad, d_pad)
    assert bias2d.shape == (1, d_pad)
    assert d_pad == _round_up(d_model, 128)

    orig_shape = h_A.shape
    out_dtype = h_A.dtype
    ha2 = h_A.reshape(-1, d_model)
    hb2 = h_B.astype(out_dtype).reshape(-1, d_model)
    n = ha2.shape[0]

    act_itemsize = jnp.dtype(out_dtype).itemsize
    w_itemsize = jnp.dtype(w_a.dtype).itemsize
    row_tile, n_pad, vmem_limit = _plan_tiles(
        n, d_pad, act_itemsize, w_itemsize, row_tile)

    # Pad only when needed (padding + final slice each cost a full extra HBM
    # pass of the activations, so the aligned case must skip them).
    needs_pad = (n_pad != n) or (d_pad != d_model)
    if needs_pad:
        ha2 = jnp.pad(ha2, ((0, n_pad - n), (0, d_pad - d_model)))
        hb2 = jnp.pad(hb2, ((0, n_pad - n), (0, d_pad - d_model)))

    grid = (n_pad // row_tile,)
    row_spec = pl.BlockSpec((row_tile, d_pad), lambda i: (i, 0))
    # Weights/bias are identical for every grid step: single-buffer them.
    w_spec = pl.BlockSpec((d_pad, d_pad), lambda i: (0, 0),
                          pipeline_mode=pl.Buffered(1))
    b_spec = pl.BlockSpec((1, d_pad), lambda i: (0, 0),
                          pipeline_mode=pl.Buffered(1))

    kernel = functools.partial(_residual_gate_mixer_kernel,
                               matmul_dtype=w_a.dtype)

    out2 = pl.pallas_call(
        kernel,
        out_shape=jax.ShapeDtypeStruct((n_pad, d_pad), out_dtype),
        grid_spec=pltpu.PrefetchScalarGridSpec(
            num_scalar_prefetch=0,
            grid=grid,
            in_specs=[row_spec, row_spec, w_spec, w_spec, b_spec],
            out_specs=row_spec,
        ),
        compiler_params=pltpu.CompilerParams(
            dimension_semantics=("parallel",),
            vmem_limit_bytes=vmem_limit,
        ),
    )(ha2, hb2, w_a, w_b, bias2d)

    if needs_pad:
        out2 = out2[:n, :d_model]
    return out2.reshape(orig_shape)


# --------------------------------------------------------------------------
# Reference + self-test
# --------------------------------------------------------------------------
def _reference(h_A, h_B, weight, bias):
    x = jnp.concatenate([h_A, h_B], axis=-1)
    gate = jax.nn.sigmoid(x @ weight.T + bias)
    return gate * h_A + (1.0 - gate) * h_B


if __name__ == "__main__":
    batch, seq, d_model = 2, 8, 32

    key = jax.random.PRNGKey(0)
    k1, k2, k3, k4 = jax.random.split(key, 4)

    h_A = jax.random.normal(k1, (batch, seq, d_model), dtype=jnp.float32)
    h_B = jax.random.normal(k2, (batch, seq, d_model), dtype=jnp.float32)

    # Deterministic parameter init (nn.Linear(2*d_model, d_model) shapes).
    bound = 1.0 / jnp.sqrt(2.0 * d_model)
    weight = jax.random.uniform(
        k3, (d_model, 2 * d_model), minval=-bound, maxval=bound, dtype=jnp.float32
    )
    bias = jax.random.uniform(
        k4, (d_model,), minval=-bound, maxval=bound, dtype=jnp.float32
    )

    ref = _reference(h_A, h_B, weight, bias)

    # 1) f32 matmul path (validation only): tight check against the reference.
    wa32, wb32, b32 = prepare_gate_params(weight, bias, matmul_dtype=jnp.float32)
    out_f32 = residual_gate_mixer(h_A, h_B, wa32, wb32, b32)
    out_f32 = jax.block_until_ready(out_f32)
    assert out_f32.shape == h_A.shape
    assert jnp.allclose(out_f32, ref, atol=1e-5, rtol=1e-5)

    # 2) bf16 weights, f32 activations: f32 accumulation & mix.
    wa, wb, b2 = prepare_gate_params(weight, bias)
    out_mixed = residual_gate_mixer(h_A, h_B, wa, wb, b2)
    out_mixed = jax.block_until_ready(out_mixed)
    assert out_mixed.shape == h_A.shape
    assert jnp.allclose(out_mixed, ref, atol=2e-2, rtol=0.0)

    # 3) End-to-end bf16 activations + output (the bandwidth-optimal path).
    h_A_bf = h_A.astype(jnp.bfloat16)
    h_B_bf = h_B.astype(jnp.bfloat16)
    ref_bf = _reference(h_A_bf.astype(jnp.float32), h_B_bf.astype(jnp.float32),
                        weight, bias)
    out_bf16 = residual_gate_mixer(h_A_bf, h_B_bf, wa, wb, b2)
    out_bf16 = jax.block_until_ready(out_bf16)
    assert out_bf16.shape == h_A.shape
    assert out_bf16.dtype == jnp.bfloat16
    assert jnp.allclose(out_bf16.astype(jnp.float32), ref_bf, atol=3e-2, rtol=0.0)

    print("KERNEL_OK")
</pallas_src>

<mosaic_0001>
module attributes {stable_mosaic.version = 11 : i64} {
  func.func @_residual_gate_mixer_kernel(%arg0: i32, %arg1: memref<8x128xf32, #tpu.memory_space<vmem>>, %arg2: memref<8x128xf32, #tpu.memory_space<vmem>>, %arg3: memref<128x128xf32, #tpu.memory_space<vmem>>, %arg4: memref<128x128xf32, #tpu.memory_space<vmem>>, %arg5: memref<1x128xf32, #tpu.memory_space<vmem>>, %arg6: memref<8x128xf32, #tpu.memory_space<vmem>>) attributes {dimension_semantics = [#tpu.dimension_semantics<parallel>], iteration_bounds = array<i64: 2>, scalar_prefetch = 0 : i64, scratch_operands = 0 : i64, tpu.core_type = #tpu.core_type<tc>, window_params = [{transform_indices = @transform_0, window_bounds = array<i64: 8, 128>}, {transform_indices = @transform_1, window_bounds = array<i64: 8, 128>}, {pipeline_mode = #tpu.pipeline_mode<synchronous>, transform_indices = @transform_2, window_bounds = array<i64: 128, 128>}, {pipeline_mode = #tpu.pipeline_mode<synchronous>, transform_indices = @transform_3, window_bounds = array<i64: 128, 128>}, {pipeline_mode = #tpu.pipeline_mode<synchronous>, transform_indices = @transform_4, window_bounds = array<i64: 1, 128>}, {transform_indices = @transform_5, window_bounds = array<i64: 8, 128>}]} {
    %c0 = arith.constant 0 : index
    %c0_0 = arith.constant 0 : index
    %0 = vector.load %arg1[%c0, %c0_0] : memref<8x128xf32, #tpu.memory_space<vmem>>, vector<8x128xf32>
    %c0_1 = arith.constant 0 : index
    %c0_2 = arith.constant 0 : index
    %1 = vector.load %arg2[%c0_1, %c0_2] : memref<8x128xf32, #tpu.memory_space<vmem>>, vector<8x128xf32>
    %c0_3 = arith.constant 0 : index
    %c0_4 = arith.constant 0 : index
    %2 = vector.load %arg3[%c0_3, %c0_4] : memref<128x128xf32, #tpu.memory_space<vmem>>, vector<128x128xf32>
    %cst = arith.constant dense<0.000000e+00> : vector<8x128xf32>
    %3 = tpu.matmul %0, %2, %cst {dimension_numbers = #tpu.dot_dimension_numbers<[1], [0], [0], [1], [0, 0, 1, 1], [], []>} : vector<8x128xf32>, vector<128x128xf32>, vector<8x128xf32> -> vector<8x128xf32>
    %c0_5 = arith.constant 0 : index
    %c0_6 = arith.constant 0 : index
    %4 = vector.load %arg4[%c0_5, %c0_6] : memref<128x128xf32, #tpu.memory_space<vmem>>, vector<128x128xf32>
    %cst_7 = arith.constant dense<0.000000e+00> : vector<8x128xf32>
    %5 = tpu.matmul %1, %4, %cst_7 {dimension_numbers = #tpu.dot_dimension_numbers<[1], [0], [0], [1], [0, 0, 1, 1], [], []>} : vector<8x128xf32>, vector<128x128xf32>, vector<8x128xf32> -> vector<8x128xf32>
    %6 = arith.addf %3, %5 : vector<8x128xf32>
    %c0_8 = arith.constant 0 : index
    %c0_9 = arith.constant 0 : index
    %7 = vector.load %arg5[%c0_8, %c0_9] : memref<1x128xf32, #tpu.memory_space<vmem>>, vector<1x128xf32>
    %8 = vector.broadcast %7 : vector<1x128xf32> to vector<8x128xf32>
    %9 = arith.addf %6, %8 : vector<8x128xf32>
    %10 = arith.negf %9 : vector<8x128xf32>
    %11 = math.exp %10 : vector<8x128xf32>
    %cst_10 = arith.constant 1.000000e+00 : f32
    %12 = vector.broadcast %cst_10 : f32 to vector<8x128xf32>
    %13 = arith.addf %12, %11 : vector<8x128xf32>
    %14 = arith.divf %12, %13 : vector<8x128xf32>
    %15 = arith.subf %0, %1 : vector<8x128xf32>
    %16 = arith.mulf %14, %15 : vector<8x128xf32>
    %17 = arith.addf %1, %16 : vector<8x128xf32>
    %c0_11 = arith.constant 0 : index
    %c0_12 = arith.constant 0 : index
    %18 = vector.load %arg6[%c0_11, %c0_12] : memref<8x128xf32, #tpu.memory_space<vmem>>, vector<8x128xf32>
    tpu.vector_store %arg6[%c0_11, %c0_12], %17 {strides = array<i32>} : memref<8x128xf32, #tpu.memory_space<vmem>>, vector<8x128xf32>,
    return
  }
  func.func @transform_0(%arg0: i32) -> (i32, i32) {
    %c0_i32 = arith.constant 0 : i32
    %c0_i32_0 = arith.constant 0 : i32
    return %arg0, %c0_i32 : i32, i32
  }
  func.func @transform_1(%arg0: i32) -> (i32, i32) {
    %c0_i32 = arith.constant 0 : i32
    %c0_i32_0 = arith.constant 0 : i32
    return %arg0, %c0_i32 : i32, i32
  }
  func.func @transform_2(%arg0: i32) -> (i32, i32) {
    %c0_i32 = arith.constant 0 : i32
    %c0_i32_0 = arith.constant 0 : i32
    %c0_i32_1 = arith.constant 0 : i32
    return %c0_i32, %c0_i32_0 : i32, i32
  }
  func.func @transform_3(%arg0: i32) -> (i32, i32) {
    %c0_i32 = arith.constant 0 : i32
    %c0_i32_0 = arith.constant 0 : i32
    %c0_i32_1 = arith.constant 0 : i32
    return %c0_i32, %c0_i32_0 : i32, i32
  }
  func.func @transform_4(%arg0: i32) -> (i32, i32) {
    %c0_i32 = arith.constant 0 : i32
    %c0_i32_0 = arith.constant 0 : i32
    %c0_i32_1 = arith.constant 0 : i32
    return %c0_i32, %c0_i32_0 : i32, i32
  }
  func.func @transform_5(%arg0: i32) -> (i32, i32) {
    %c0_i32 = arith.constant 0 : i32
    %c0_i32_0 = arith.constant 0 : i32
    return %arg0, %c0_i32 : i32, i32
  }
}

</mosaic_0001>

<llo_original>
// kernel: tpu_custom_call.1
$region0: #{tpu_custom_call.1}
  #allocation0 [shape = 'u32[]', space=smem, size = 0x4, offset = 0x4, fixed_abs, tag = 'smem constant byte address 0x4 - core index']
  #allocation1 [shape = 'u32[144,128]{1,0:T(1,128)}', space=vmem, size = 0x12000, scoped, tag = 'internal scratch']
  %s0 = inlined_call_operand.hbm [shape: f32[16,128], index: 0, kind: input, shape index: {}]
  %s1 = inlined_call_operand.hbm [shape: f32[16,128], index: 1, kind: input, shape index: {}]
  %s2 = inlined_call_operand.hbm [shape: f32[128,128], index: 2, kind: input, shape index: {}]
  %s3 = inlined_call_operand.hbm [shape: f32[128,128], index: 3, kind: input, shape index: {}]
  %s4 = inlined_call_operand.vmem [shape: f32[1,128], index: 4, kind: input, shape index: {}]
  %s5 = inlined_call_operand.hbm [shape: f32[16,128], index: 5, kind: output, shape index: {}]
  %s6 = sld [smem:[#allocation0]]
  $region69: #{tpu_custom_call.1} parent=0
    _
  %s8 = ssub.s32 1, %s6
  %s9 = scalar_select 0, %s8, %s6
  $region1: #{tpu_custom_call.1} parent=0
    #allocation2 [shape = 'u8[8192]{0}', space=vmem, size = 0x2000, scoped, tag = 'input window, operand 0']
    #allocation3 [shape = 's32[2]{0}', space=sflag, size = 0x8, scoped, tag = 'scoped memory for tpu_custom_call.1']
    #allocation4 [shape = 's32[2]{0}', space=sflag, size = 0x8, scoped, tag = 'scoped memory for tpu_custom_call.1']
    #allocation5 [shape = 'u8[8192]{0}', space=vmem, size = 0x2000, scoped, tag = 'input window, operand 1']
    #allocation6 [shape = 's32[2]{0}', space=sflag, size = 0x8, scoped, tag = 'scoped memory for tpu_custom_call.1']
    #allocation7 [shape = 'u8[65536]{0}', space=vmem, size = 0x10000, scoped, tag = 'input window, operand 2, single buffered']
    #allocation8 [shape = 'u8[65536]{0}', space=vmem, size = 0x10000, scoped, tag = 'input window, operand 3, single buffered']
    #allocation9 [shape = 's32[1]{0}', space=sflag, size = 0x4, scoped, tag = 'scoped memory for tpu_custom_call.1']
    #allocation10 [shape = 'u8[8192]{0}', space=vmem, size = 0x2000, scoped, tag = 'output window, operand 0']
    %10 = vsyncpa [#allocation3], 0
    %s11 = scalar_lea.sflag [#allocation3], 1
    %12 = vsyncpa %s11, 0
    %13 = vsyncpa [#allocation6], 0
    %s14 = scalar_lea.sflag [#allocation6], 1
    %15 = vsyncpa %s14, 0
    %16 = vsyncpa [#allocation9], 0
    %17 = vsyncpa [#allocation4], 0
    %s18 = scalar_lea.sflag [#allocation4], 1
    %19 = vsyncpa %s18, 0
    loop: start=0, step=1, limit=4
    $region2: #{tpu_custom_call.1} parent=1 // loop_pre_header
      _
    $region3: #{tpu_custom_call.1} parent=1 // loop_header
      %s21 = sphi 0, %s25
      %p22 = scmp.ge.s32.totalorder %s21, 4
      %s31 = sphi 0, %s33
      %s34 = sphi 0, %s31
      %s35 = sphi 0, %s34
      %s51 = sphi 0, %s35
      %s57 = sphi 0, %s59
      %s60 = sphi 0, %s57
      %s61 = sphi 0, %s60
      %s77 = sphi 0, %s61
      %s81 = sphi 0, %s81
      %s83 = sphi 0, %s81
      %s84 = sphi 0, %s83
      %s98 = sphi 0, %s84
      %s102 = sphi 0, %s102
      %s104 = sphi 0, %s102
      %s105 = sphi 0, %s104
      %s119 = sphi 0, %s105
      %s123 = sphi 0, %s123
      %s125 = sphi 0, %s123
      %s126 = sphi 0, %s125
      %s140 = sphi 0, %s126
      %s146 = sphi 0, %s148
      %s149 = sphi 0, %s146
      %s150 = sphi 0, %s149
      %s166 = sphi 0, %s150
    $region4: #{tpu_custom_call.1} parent=1 // loop_header_branch
      %24 = sbr.rel (%p22) target = $region8
    $region5: #{tpu_custom_call.1} parent=1 // loop_body
      %s26 = ssub.s32 %s21, 1
      %s27 = ssub.s32 %s21, 2
      %s28 = sadd.s32 %s21, 1
      %s29 = ssub.s32 %s21, %s28
      %p30 = scmp.eq.s32.totalorder %s29, 0
      %s32 = sadd.s32 %s31, 1
      %s33 = scalar_select %p30, %s31, %s32
      %p36 = pneg %p30
      %p37 = scmp.eq.s32.totalorder %s21, 1
      %p38 = por %p36, %p37
      %p39 = scmp.ne.s32.totalorder %s31, %s34
      %p40 = scmp.eq.s32.totalorder %s21, 0
      %p41 = por %p39, %p40
      %p42 = scmp.ne.s32.totalorder %s31, %s34
      %p43 = scmp.eq.s32.totalorder %s26, 1
      %p44 = por %p42, %p43
      %p45 = scmp.ne.s32.totalorder %s34, %s35
      %p46 = scmp.eq.s32.totalorder %s26, 0
      %p47 = por %p45, %p46
      %p48 = scmp.ne.s32.totalorder %s34, %s35
      %p49 = scmp.eq.s32.totalorder %s27, 1
      %p50 = por %p48, %p49
      %p52 = scmp.ne.s32.totalorder %s35, %s51
      %p53 = scmp.eq.s32.totalorder %s27, 0
      %p54 = por %p52, %p53
      %s55 = ssub.s32 %s21, %s28
      %p56 = scmp.eq.s32.totalorder %s55, 0
      %s58 = sadd.s32 %s57, 1
      %s59 = scalar_select %p56, %s57, %s58
      %p62 = pneg %p56
      %p63 = scmp.eq.s32.totalorder %s21, 1
      %p64 = por %p62, %p63
      %p65 = scmp.ne.s32.totalorder %s57, %s60
      %p66 = scmp.eq.s32.totalorder %s21, 0
      %p67 = por %p65, %p66
      %p68 = scmp.ne.s32.totalorder %s57, %s60
      %p69 = scmp.eq.s32.totalorder %s26, 1
      %p70 = por %p68, %p69
      %p71 = scmp.ne.s32.totalorder %s60, %s61
      %p72 = scmp.eq.s32.totalorder %s26, 0
      %p73 = por %p71, %p72
      %p74 = scmp.ne.s32.totalorder %s60, %s61
      %p75 = scmp.eq.s32.totalorder %s27, 1
      %p76 = por %p74, %p75
      %p78 = scmp.ne.s32.totalorder %s61, %s77
      %p79 = scmp.eq.s32.totalorder %s27, 0
      %p80 = por %p78, %p79
      %s82 = sadd.s32 %s81, 1
      %p85 = scmp.eq.s32.totalorder %s21, 1
      %p86 = scmp.ne.s32.totalorder %s81, %s83
      %p87 = scmp.eq.s32.totalorder %s21, 0
      %p88 = por %p86, %p87
      %p89 = scmp.ne.s32.totalorder %s81, %s83
      %p90 = scmp.eq.s32.totalorder %s26, 1
      %p91 = por %p89, %p90
      %p92 = scmp.ne.s32.totalorder %s83, %s84
      %p93 = scmp.eq.s32.totalorder %s26, 0
      %p94 = por %p92, %p93
      %p95 = scmp.ne.s32.totalorder %s83, %s84
      %p96 = scmp.eq.s32.totalorder %s27, 1
      %p97 = por %p95, %p96
      %p99 = scmp.ne.s32.totalorder %s84, %s98
      %p100 = scmp.eq.s32.totalorder %s27, 0
      %p101 = por %p99, %p100
      %s103 = sadd.s32 %s102, 1
      %p106 = scmp.eq.s32.totalorder %s21, 1
      %p107 = scmp.ne.s32.totalorder %s102, %s104
      %p108 = scmp.eq.s32.totalorder %s21, 0
      %p109 = por %p107, %p108
      %p110 = scmp.ne.s32.totalorder %s102, %s104
      %p111 = scmp.eq.s32.totalorder %s26, 1
      %p112 = por %p110, %p111
      %p113 = scmp.ne.s32.totalorder %s104, %s105
      %p114 = scmp.eq.s32.totalorder %s26, 0
      %p115 = por %p113, %p114
      %p116 = scmp.ne.s32.totalorder %s104, %s105
      %p117 = scmp.eq.s32.totalorder %s27, 1
      %p118 = por %p116, %p117
      %p120 = scmp.ne.s32.totalorder %s105, %s119
      %p121 = scmp.eq.s32.totalorder %s27, 0
      %p122 = por %p120, %p121
      %s124 = sadd.s32 %s123, 1
      %p127 = scmp.eq.s32.totalorder %s21, 1
      %p128 = scmp.ne.s32.totalorder %s123, %s125
      %p129 = scmp.eq.s32.totalorder %s21, 0
      %p130 = por %p128, %p129
      %p131 = scmp.ne.s32.totalorder %s123, %s125
      %p132 = scmp.eq.s32.totalorder %s26, 1
      %p133 = por %p131, %p132
      %p134 = scmp.ne.s32.totalorder %s125, %s126
      %p135 = scmp.eq.s32.totalorder %s26, 0
      %p136 = por %p134, %p135
      %p137 = scmp.ne.s32.totalorder %s125, %s126
      %p138 = scmp.eq.s32.totalorder %s27, 1
      %p139 = por %p137, %p138
      %p141 = scmp.ne.s32.totalorder %s126, %s140
      %p142 = scmp.eq.s32.totalorder %s27, 0
      %p143 = por %p141, %p142
      %s144 = ssub.s32 %s21, %s28
      %p145 = scmp.eq.s32.totalorder %s144, 0
      %s147 = sadd.s32 %s146, 1
      %s148 = scalar_select %p145, %s146, %s147
      %p151 = pneg %p145
      %p152 = scmp.eq.s32.totalorder %s21, 1
      %p153 = por %p151, %p152
      %p154 = scmp.ne.s32.totalorder %s146, %s149
      %p155 = scmp.eq.s32.totalorder %s21, 0
      %p156 = por %p154, %p155
      %p157 = scmp.ne.s32.totalorder %s146, %s149
      %p158 = scmp.eq.s32.totalorder %s26, 1
      %p159 = por %p157, %p158
      %p160 = scmp.ne.s32.totalorder %s149, %s150
      %p161 = scmp.eq.s32.totalorder %s26, 0
      %p162 = por %p160, %p161
      %p163 = scmp.ne.s32.totalorder %s149, %s150
      %p164 = scmp.eq.s32.totalorder %s27, 1
      %p165 = por %p163, %p164
      %p167 = scmp.ne.s32.totalorder %s150, %s166
      %p168 = scmp.eq.s32.totalorder %s27, 0
      %p169 = por %p167, %p168
      %p170 = scmp.le.s32.totalorder 1, %s21
      %p171 = scmp.lt.s32.totalorder %s21, 3
      %p172 = pnand %p170, %p171
      %p173 = pneg %p172
      // Predicated region
      $region9: #{tpu_custom_call.1} parent=5 // pred_check
        _
      $region10: #{tpu_custom_call.1} parent=5 // pred_check_branch
        %175 = sbr.rel (%p172) target = $region12
      $region11: #{tpu_custom_call.1} parent=5 // pred_region
        %s176 = ssub.s32 %s21, 1
        // Predicated region
        $region13: #{tpu_custom_call.1} parent=11 // pred_check
          %p177 = pneg %p94
        $region14: #{tpu_custom_call.1} parent=11 // pred_check_branch
          %179 = sbr.rel (%p177) target = $region16
        $region15: #{tpu_custom_call.1} parent=11 // pred_region
          %s181 = ssub.s32 2048, 2048
          %182 = vsyncadd [#allocation6], %s181
          %s183 = sshll.u32 [#allocation7], 4
          %s184 = int_to_ptr.vmem [resolvable:$true] %s183
          %189 = dma.hbm_to_vmem [thread:$0]  %s2, 2048, %s184, [#allocation6], 128, 128, 8
        $region16: #{tpu_custom_call.1} parent=11 // pred_fallthru
          _
        // Predicated region
        $region17: #{tpu_custom_call.1} parent=11 // pred_check
          %p190 = pneg %p115
        $region18: #{tpu_custom_call.1} parent=11 // pred_check_branch
          %192 = sbr.rel (%p190) target = $region20
        $region19: #{tpu_custom_call.1} parent=11 // pred_region
          %s194 = ssub.s32 2048, 2048
          %195 = vsyncadd [#allocation9], %s194
          %s196 = sshll.u32 [#allocation8], 4
          %s197 = int_to_ptr.vmem [resolvable:$true] %s196
          %202 = dma.hbm_to_vmem [thread:$0]  %s3, 2048, %s197, [#allocation9], 128, 128, 8
        $region20: #{tpu_custom_call.1} parent=11 // pred_fallthru
          _
        // Predicated region
        $region21: #{tpu_custom_call.1} parent=11 // pred_check
          %p203 = pneg %p136
        $region22: #{tpu_custom_call.1} parent=11 // pred_check_branch
          %205 = sbr.rel (%p203) target = $region24
        $region23: #{tpu_custom_call.1} parent=11 // pred_region
          _
        $region24: #{tpu_custom_call.1} parent=11 // pred_fallthru
          _
      $region12: #{tpu_custom_call.1} parent=5 // pred_fallthru
        _
      %p206 = scmp.lt.s32.totalorder %s21, 2
      // Predicated region
      $region25: #{tpu_custom_call.1} parent=5 // pred_check
        %p207 = pneg %p206
      $region26: #{tpu_custom_call.1} parent=5 // pred_check_branch
        %209 = sbr.rel (%p207) target = $region28
      $region27: #{tpu_custom_call.1} parent=5 // pred_region
        // Predicated region
        $region29: #{tpu_custom_call.1} parent=27 // pred_check
          %p210 = pneg %p41
        $region30: #{tpu_custom_call.1} parent=27 // pred_check_branch
          %212 = sbr.rel (%p210) target = $region32
        $region31: #{tpu_custom_call.1} parent=27 // pred_region
          %s213 = sand.u32 %s31, 1
          %s214 = scalar_lea.sflag [#allocation3], %s213
          %s215 = sand.u32 %s31, 1
          %s216 = smul.addr %s215, 8
          %s217 = scalar_lea.vmem [#allocation2], %s216
          %s219 = ssub.s32 128, 128
          %220 = vsyncadd %s214, %s219
          %s221 = smul.addr %s21, 128
          %s222 = scalar_lea.hbm %s0, %s221
          %s224 = sshll.u32 %s217, 4
          %s225 = int_to_ptr.vmem [resolvable:$true] %s224
          %227 = dma.hbm_to_vmem [thread:$0]  %s222, 128, %s225, %s214
        $region32: #{tpu_custom_call.1} parent=27 // pred_fallthru
          _
        // Predicated region
        $region33: #{tpu_custom_call.1} parent=27 // pred_check
          %p228 = pneg %p67
        $region34: #{tpu_custom_call.1} parent=27 // pred_check_branch
          %230 = sbr.rel (%p228) target = $region36
        $region35: #{tpu_custom_call.1} parent=27 // pred_region
          %s231 = sand.u32 %s21, 1
          %s232 = scalar_lea.sflag [#allocation6], %s231
          %s233 = sand.u32 %s57, 1
          %s234 = smul.addr %s233, 8
          %s235 = scalar_lea.vmem [#allocation5], %s234
          %s237 = ssub.s32 128, 128
          %238 = vsyncadd %s232, %s237
          %s239 = smul.addr %s21, 128
          %s240 = scalar_lea.hbm %s1, %s239
          %s242 = sshll.u32 %s235, 4
          %s243 = int_to_ptr.vmem [resolvable:$true] %s242
          %245 = dma.hbm_to_vmem [thread:$0]  %s240, 128, %s243, %s232
        $region36: #{tpu_custom_call.1} parent=27 // pred_fallthru
          _
      $region28: #{tpu_custom_call.1} parent=5 // pred_fallthru
        _
      %p246 = scmp.le.s32.totalorder 1, %s21
      %p247 = scmp.lt.s32.totalorder %s21, 3
      %p248 = pnand %p246, %p247
      %p249 = pneg %p248
      // Predicated region
      $region37: #{tpu_custom_call.1} parent=5 // pred_check
        _
      $region38: #{tpu_custom_call.1} parent=5 // pred_check_branch
        %251 = sbr.rel (%p248) target = $region40
      $region39: #{tpu_custom_call.1} parent=5 // pred_region
        %s252 = ssub.s32 %s21, 1
        %s253 = sand.u32 %s34, 1
        %s254 = scalar_lea.sflag [#allocation3], %s253
        %s255 = sand.u32 %s34, 1
        %s256 = smul.addr %s255, 8
        %s257 = scalar_lea.vmem [#allocation2], %s256
        // Predicated region
        $region41: #{tpu_custom_call.1} parent=39 // pred_check
          %p258 = pneg %p47
        $region42: #{tpu_custom_call.1} parent=39 // pred_check_branch
          %260 = sbr.rel (%p258) target = $region44
        $region43: #{tpu_custom_call.1} parent=39 // pred_region
          %261 = dma.done %s254, 128
        $region44: #{tpu_custom_call.1} parent=39 // pred_fallthru
          _
        %s262 = sand.u32 %s26, 1
        %s263 = scalar_lea.sflag [#allocation6], %s262
        %s264 = sand.u32 %s60, 1
        %s265 = smul.addr %s264, 8
        %s266 = scalar_lea.vmem [#allocation5], %s265
        // Predicated region
        $region45: #{tpu_custom_call.1} parent=39 // pred_check
          %p267 = pneg %p73
        $region46: #{tpu_custom_call.1} parent=39 // pred_check_branch
          %269 = sbr.rel (%p267) target = $region48
        $region47: #{tpu_custom_call.1} parent=39 // pred_region
          %270 = dma.done %s263, 128
        $region48: #{tpu_custom_call.1} parent=39 // pred_fallthru
          _
        // Predicated region
        $region49: #{tpu_custom_call.1} parent=39 // pred_check
          %p271 = pneg %p94
        $region50: #{tpu_custom_call.1} parent=39 // pred_check_branch
          %273 = sbr.rel (%p271) target = $region52
        $region51: #{tpu_custom_call.1} parent=39 // pred_region
          %274 = dma.done [#allocation6], 2048
        $region52: #{tpu_custom_call.1} parent=39 // pred_fallthru
          _
        // Predicated region
        $region53: #{tpu_custom_call.1} parent=39 // pred_check
          %p275 = pneg %p115
        $region54: #{tpu_custom_call.1} parent=39 // pred_check_branch
          %277 = sbr.rel (%p275) target = $region56
        $region55: #{tpu_custom_call.1} parent=39 // pred_region
          %278 = dma.done [#allocation9], 2048
        $region56: #{tpu_custom_call.1} parent=39 // pred_fallthru
          _
        %s279 = sand.u32 %s34, 1
        %s280 = scalar_lea.sflag [#allocation3], %s279
        %s281 = sand.u32 %s34, 1
        %s282 = smul.addr %s281, 8
        %s283 = scalar_lea.vmem [#allocation2], %s282
        %p284 = pneg %p47
        %p285 = pneg %p44
        %s286 = sand.u32 %s26, 1
        %s287 = scalar_lea.sflag [#allocation6], %s286
        %s288 = sand.u32 %s60, 1
        %s289 = smul.addr %s288, 8
        %s290 = scalar_lea.vmem [#allocation5], %s289
        %p291 = pneg %p73
        %p292 = pneg %p70
        %p293 = pneg %p94
        %p294 = pneg %p91
        %p295 = pneg %p115
        %p296 = pneg %p112
        %p297 = pneg %p136
        %p298 = pneg %p133
        %p299 = pneg %p162
        %p300 = pneg %p159
        %s301 = sand.u32 %s149, 1
        %s302 = scalar_lea.sflag [#allocation4], %s301
        %s303 = sand.u32 %s149, 1
        %s304 = smul.addr %s303, 8
        %s305 = scalar_lea.vmem [#allocation10], %s304
        %v306 = vld [vmem:[%s257] sm:$0xff]
        %v307 = vld [vmem:[%s266] sm:$0xff]
        %v308 = vld [vmem:[#allocation7] sm:$0xff]
        %v309 = vld [vmem:[#allocation7 + $0x8] sm:$0xff]
        %v310 = vld [vmem:[#allocation7 + $0x10] sm:$0xff]
        %v311 = vld [vmem:[#allocation7 + $0x18] sm:$0xff]
        %v312 = vld [vmem:[#allocation7 + $0x20] sm:$0xff]
        %v313 = vld [vmem:[#allocation7 + $0x28] sm:$0xff]
        %v314 = vld [vmem:[#allocation7 + $0x30] sm:$0xff]
        %v315 = vld [vmem:[#allocation7 + $0x38] sm:$0xff]
        %v316 = vld [vmem:[#allocation7 + $0x40] sm:$0xff]
        %v317 = vld [vmem:[#allocation7 + $0x48] sm:$0xff]
        %v318 = vld [vmem:[#allocation7 + $0x50] sm:$0xff]
        %v319 = vld [vmem:[#allocation7 + $0x58] sm:$0xff]
        %v320 = vld [vmem:[#allocation7 + $0x60] sm:$0xff]
        %v321 = vld [vmem:[#allocation7 + $0x68] sm:$0xff]
        %v322 = vld [vmem:[#allocation7 + $0x70] sm:$0xff]
        %v323 = vld [vmem:[#allocation7 + $0x78] sm:$0xff]
        %v324 = vld [vmem:[#allocation8] sm:$0xff]
        %v325 = vld [vmem:[#allocation8 + $0x8] sm:$0xff]
        %v326 = vld [vmem:[#allocation8 + $0x10] sm:$0xff]
        %v327 = vld [vmem:[#allocation8 + $0x18] sm:$0xff]
        %v328 = vld [vmem:[#allocation8 + $0x20] sm:$0xff]
        %v329 = vld [vmem:[#allocation8 + $0x28] sm:$0xff]
        %v330 = vld [vmem:[#allocation8 + $0x30] sm:$0xff]
        %v331 = vld [vmem:[#allocation8 + $0x38] sm:$0xff]
        %v332 = vld [vmem:[#allocation8 + $0x40] sm:$0xff]
        %v333 = vld [vmem:[#allocation8 + $0x48] sm:$0xff]
        %v334 = vld [vmem:[#allocation8 + $0x50] sm:$0xff]
        %v335 = vld [vmem:[#allocation8 + $0x58] sm:$0xff]
        %v336 = vld [vmem:[#allocation8 + $0x60] sm:$0xff]
        %v337 = vld [vmem:[#allocation8 + $0x68] sm:$0xff]
        %v338 = vld [vmem:[#allocation8 + $0x70] sm:$0xff]
        %v339 = vld [vmem:[#allocation8 + $0x78] sm:$0xff]
        %340 = vmatprep.subr.mxu0 0.0
        %341 = vmatpush1.msra.mxu0 %v339
        %342 = vmatprep.subr.mxu0 0.0
        %343 = vmatpush1.msra.mxu0 %v338
        %344 = vmatprep.subr.mxu0 0.0
        %345 = vmatpush1.msra.mxu0 %v337
        %346 = vmatprep.subr.mxu0 0.0
        %347 = vmatpush1.msra.mxu0 %v336
        %348 = vmatprep.subr.mxu0 0.0
        %349 = vmatpush1.msra.mxu0 %v335
        %350 = vmatprep.subr.mxu0 0.0
        %351 = vmatpush1.msra.mxu0 %v334
        %352 = vmatprep.subr.mxu0 0.0
        %353 = vmatpush1.msra.mxu0 %v333
        %354 = vmatprep.subr.mxu0 0.0
        %355 = vmatpush1.msra.mxu0 %v332
        %356 = vmatprep.subr.mxu0 0.0
        %357 = vmatpush1.msra.mxu0 %v331
        %358 = vmatprep.subr.mxu0 0.0
        %359 = vmatpush1.msra.mxu0 %v330
        %360 = vmatprep.subr.mxu0 0.0
        %361 = vmatpush1.msra.mxu0 %v329
        %362 = vmatprep.subr.mxu0 0.0
        %363 = vmatpush1.msra.mxu0 %v328
        %364 = vmatprep.subr.mxu0 0.0
        %365 = vmatpush1.msra.mxu0 %v327
        %366 = vmatprep.subr.mxu0 0.0
        %367 = vmatpush1.msra.mxu0 %v326
        %368 = vmatprep.subr.mxu0 0.0
        %369 = vmatpush1.msra.mxu0 %v325
        %370 = vmatprep.subr.mxu0 0.0
        %371 = vmatpush1.msra.mxu0 %v324
        %372 = vmatprep.subr.mxu0 0.0
        %373 = vmatpush2.msra.mxu0 0.0
        %374 = vmatprep.subr.mxu0 0.0
        %375 = vmatpush2.msra.mxu0 0.0
        %376 = vmatprep.subr.mxu0 0.0
        %377 = vmatpush2.msra.mxu0 0.0
        %378 = vmatprep.subr.mxu0 0.0
        %379 = vmatpush2.msra.mxu0 0.0
        %380 = vmatprep.subr.mxu0 0.0
        %381 = vmatpush2.msra.mxu0 0.0
        %382 = vmatprep.subr.mxu0 0.0
        %383 = vmatpush2.msra.mxu0 0.0
        %384 = vmatprep.subr.mxu0 0.0
        %385 = vmatpush2.msra.mxu0 0.0
        %386 = vmatprep.subr.mxu0 0.0
        %387 = vmatpush2.msra.mxu0 0.0
        %388 = vmatprep.subr.mxu0 0.0
        %389 = vmatpush2.msra.mxu0 0.0
        %390 = vmatprep.subr.mxu0 0.0
        %391 = vmatpush2.msra.mxu0 0.0
        %392 = vmatprep.subr.mxu0 0.0
        %393 = vmatpush2.msra.mxu0 0.0
        %394 = vmatprep.subr.mxu0 0.0
        %395 = vmatpush2.msra.mxu0 0.0
        %396 = vmatprep.subr.mxu0 0.0
        %397 = vmatpush2.msra.mxu0 0.0
        %398 = vmatprep.subr.mxu0 0.0
        %399 = vmatpush2.msra.mxu0 0.0
        %400 = vmatprep.subr.mxu0 0.0
        %401 = vmatpush2.msra.mxu0 0.0
        %402 = vmatprep.subr.mxu0 0.0
        %403 = vmatpush2.msra.mxu0 0.0
        %404 = vmatprep.mubr.f32.mxu0 0.0
        %405 = vmatmul.mubr.f32.gmra.mxu0 %v307
        %v406 = vpop.f32.mrf.mxu0
        %v407 = vadd.f32 0.0, %v406
        %v408 = vpop.f32.mrf.mxu0
        %409 = vdwg.mxu0
        %410 = vmatprep.subr.mxu0 0.0
        %411 = vmatpush1.msra.mxu0 %v323
        %412 = vmatprep.subr.mxu0 0.0
        %413 = vmatpush1.msra.mxu0 %v322
        %414 = vmatprep.subr.mxu0 0.0
        %415 = vmatpush1.msra.mxu0 %v321
        %416 = vmatprep.subr.mxu0 0.0
        %417 = vmatpush1.msra.mxu0 %v320
        %418 = vmatprep.subr.mxu0 0.0
        %419 = vmatpush1.msra.mxu0 %v319
        %420 = vmatprep.subr.mxu0 0.0
        %421 = vmatpush1.msra.mxu0 %v318
        %422 = vmatprep.subr.mxu0 0.0
        %423 = vmatpush1.msra.mxu0 %v317
        %424 = vmatprep.subr.mxu0 0.0
        %425 = vmatpush1.msra.mxu0 %v316
        %426 = vmatprep.subr.mxu0 0.0
        %427 = vmatpush1.msra.mxu0 %v315
        %428 = vmatprep.subr.mxu0 0.0
        %429 = vmatpush1.msra.mxu0 %v314
        %430 = vmatprep.subr.mxu0 0.0
        %431 = vmatpush1.msra.mxu0 %v313
        %432 = vmatprep.subr.mxu0 0.0
        %433 = vmatpush1.msra.mxu0 %v312
        %434 = vmatprep.subr.mxu0 0.0
        %435 = vmatpush1.msra.mxu0 %v311
        %436 = vmatprep.subr.mxu0 0.0
        %437 = vmatpush1.msra.mxu0 %v310
        %438 = vmatprep.subr.mxu0 0.0
        %439 = vmatpush1.msra.mxu0 %v309
        %440 = vmatprep.subr.mxu0 0.0
        %441 = vmatpush1.msra.mxu0 %v308
        %442 = vmatprep.subr.mxu0 0.0
        %443 = vmatpush2.msra.mxu0 0.0
        %444 = vmatprep.subr.mxu0 0.0
        %445 = vmatpush2.msra.mxu0 0.0
        %446 = vmatprep.subr.mxu0 0.0
        %447 = vmatpush2.msra.mxu0 0.0
        %448 = vmatprep.subr.mxu0 0.0
        %449 = vmatpush2.msra.mxu0 0.0
        %450 = vmatprep.subr.mxu0 0.0
        %451 = vmatpush2.msra.mxu0 0.0
        %452 = vmatprep.subr.mxu0 0.0
        %453 = vmatpush2.msra.mxu0 0.0
        %454 = vmatprep.subr.mxu0 0.0
        %455 = vmatpush2.msra.mxu0 0.0
        %456 = vmatprep.subr.mxu0 0.0
        %457 = vmatpush2.msra.mxu0 0.0
        %458 = vmatprep.subr.mxu0 0.0
        %459 = vmatpush2.msra.mxu0 0.0
        %460 = vmatprep.subr.mxu0 0.0
        %461 = vmatpush2.msra.mxu0 0.0
        %462 = vmatprep.subr.mxu0 0.0
        %463 = vmatpush2.msra.mxu0 0.0
        %464 = vmatprep.subr.mxu0 0.0
        %465 = vmatpush2.msra.mxu0 0.0
        %466 = vmatprep.subr.mxu0 0.0
        %467 = vmatpush2.msra.mxu0 0.0
        %468 = vmatprep.subr.mxu0 0.0
        %469 = vmatpush2.msra.mxu0 0.0
        %470 = vmatprep.subr.mxu0 0.0
        %471 = vmatpush2.msra.mxu0 0.0
        %472 = vmatprep.subr.mxu0 0.0
        %473 = vmatpush2.msra.mxu0 0.0
        %474 = vmatprep.mubr.f32.mxu0 0.0
        %475 = vmatmul.mubr.f32.gmra.mxu0 %v306
        %v476 = vpop.f32.mrf.mxu0
        %v477 = vadd.f32 %v407, %v476
        %v478 = vpop.f32.mrf.mxu0
        %479 = vdwg.mxu0
        %v480 = vld [vmem:[%s4] sm:$0x1]
        %v482 = vlaneseq
        %v483 = vshrl.u32 %v482, 7
        %v484 = vsub.s32 0, %v483
        %v485 = vrot.slane %v480, %v484
        %v487 = vadd.f32 %v477, %v485
        %v488 = vxor.u32 %v487, 2147483648
        %v489 = vmul.f32 %v488, 1.442695
        %v490 = vpow.pop %v489
        %v491 = vadd.f32 %v490, 1.0
        %v492 = vrcp.pop %v491
        %v493 = vmul.f32 1.0, %v492
        %v494 = vsub.f32 %v306, %v307
        %v495 = vmul.f32 %v493, %v494
        %v496 = vadd.f32 %v307, %v495
        %497 = vst [vmem:[%s305] sm:$0xff] %v496
        %s498 = sand.u32 %s149, 1
        %s499 = scalar_lea.sflag [#allocation4], %s498
        %s500 = sand.u32 %s149, 1
        %s501 = smul.addr %s500, 8
        %s502 = scalar_lea.vmem [#allocation10], %s501
        // Predicated region
        $region57: #{tpu_custom_call.1} parent=39 // pred_check
          %p503 = pneg %p159
        $region58: #{tpu_custom_call.1} parent=39 // pred_check_branch
          %505 = sbr.rel (%p503) target = $region60
        $region59: #{tpu_custom_call.1} parent=39 // pred_region
          %s507 = ssub.s32 128, 128
          %508 = vsyncadd %s499, %s507
          %s509 = smul.addr %s26, 128
          %s510 = scalar_lea.hbm %s5, %s509
          %s512 = sshll.u32 %s502, 4
          %s513 = int_to_ptr.vmem [resolvable:$true] %s512
          %515 = dma.vmem_to_hbm [thread:$0]  %s513, 128, %s510, %s499
        $region60: #{tpu_custom_call.1} parent=39 // pred_fallthru
          _
      $region40: #{tpu_custom_call.1} parent=5 // pred_fallthru
        _
      %p516 = scmp.le.s32.totalorder 2, %s21
      // Predicated region
      $region61: #{tpu_custom_call.1} parent=5 // pred_check
        %p517 = pneg %p516
      $region62: #{tpu_custom_call.1} parent=5 // pred_check_branch
        %519 = sbr.rel (%p517) target = $region64
      $region63: #{tpu_custom_call.1} parent=5 // pred_region
        %s520 = ssub.s32 %s21, 2
        // Predicated region
        $region65: #{tpu_custom_call.1} parent=63 // pred_check
          %p521 = pneg %p165
        $region66: #{tpu_custom_call.1} parent=63 // pred_check_branch
          %523 = sbr.rel (%p521) target = $region68
        $region67: #{tpu_custom_call.1} parent=63 // pred_region
          %s524 = sand.u32 %s150, 1
          %s525 = scalar_lea.sflag [#allocation4], %s524
          %s526 = sand.u32 %s150, 1
          %s527 = smul.addr %s526, 8
          %s528 = scalar_lea.vmem [#allocation10], %s527
          %529 = dma.done %s525, 128
        $region68: #{tpu_custom_call.1} parent=63 // pred_fallthru
          _
      $region64: #{tpu_custom_call.1} parent=5 // pred_fallthru
        _
    $region6: #{tpu_custom_call.1} parent=1 // loop_footer
      %s25 = sadd.s32 1, %s21
    $region7: #{tpu_custom_call.1} parent=1 // loop_footer_branch
      %20 = sbr.rel target = $region3
    $region8: #{tpu_custom_call.1} parent=1 // loop_exit
      _
    %530 = vsyncpa [#allocation3], 1
    %s531 = scalar_lea.sflag [#allocation3], 1
    %532 = vsyncpa %s531, 1
    %533 = vsyncpa [#allocation6], 1
    %s534 = scalar_lea.sflag [#allocation6], 1
    %535 = vsyncpa %s534, 1
    %536 = vsyncpa [#allocation9], 1
    %537 = vsyncpa [#allocation4], 1
    %s538 = scalar_lea.sflag [#allocation4], 1
    %539 = vsyncpa %s538, 1

</llo_original>
